<compile_context>
chip_gen: v6e
topology: v6e:2x2x1
jax: 0.10.0
libtpu: 0.0.40
codegen_flags: <defaults>
</compile_context>

<pallas_src>
import functools

import jax
import jax.numpy as jnp
from jax import lax
from jax.experimental import pallas as pl
from jax.experimental.pallas import tpu as pltpu

EPS = 1e-5


def _round_up(x, m):
    return (x + m - 1) // m * m


def _fused_conv_bn_relu_kernel(xp_ref, w_ref, gamma_ref, beta_ref, mask_ref,
                               o_ref, *, n_batch, tap_offsets, l_pad, m_count,
                               relu, bn):
    """Whole-batch fused Conv2d + BatchNorm2d(batch stats) + ReLU.

    xp_ref   : (N, Cin, Lp)    zero-padded input, flattened spatial dim
    w_ref    : (Cout, K)       K = KH*KW*Cin, (kh, kw, cin) ordering
    gamma_ref: (Cout, 1)
    beta_ref : (Cout, 1)
    mask_ref : (1, N*Lpad)     1.0 on lanes that are real (strided) outputs
    o_ref    : (N, Cout, Lpad)
    """
    # ---- in-kernel im2col: lane-shifted slices of the flat padded input ----
    per_sample = []
    for n in range(n_batch):
        taps = [xp_ref[n, :, pl.ds(off, l_pad)] for off in tap_offsets]
        per_sample.append(jnp.concatenate(taps, axis=0))       # (K, Lpad)
    patches = jnp.concatenate(per_sample, axis=1)               # (K, N*Lpad)

    # ---- single MXU matmul, f32 accumulation ----
    y = jnp.dot(w_ref[...], patches, preferred_element_type=jnp.float32)

    mask = mask_ref[...]                                        # (1, N*Lpad)
    if bn:
        inv_m = 1.0 / m_count
        mean = jnp.sum(y * mask, axis=1, keepdims=True) * inv_m      # (Cout,1)
        centered = (y - mean) * mask
        var = jnp.sum(centered * centered, axis=1, keepdims=True) * inv_m
        scale = gamma_ref[...] * lax.rsqrt(var + EPS)
        bias = beta_ref[...] - mean * scale
        y = y * scale + bias
    if relu:
        y = jnp.maximum(y, 0.0)
    y = y.astype(o_ref.dtype)

    for n in range(n_batch):            # lane-aligned (multiple-of-128) writes
        o_ref[n] = y[:, n * l_pad:(n + 1) * l_pad]


def basic_conv(x, weight, gamma, beta, *, stride=1, padding=0, dilation=1,
               relu=True, bn=True, matmul_dtype=None):
    """x: (N, Cin, H, W) NCHW; weight: (Cout, Cin, KH, KW); groups=1, bias=False."""
    N, Cin, H, W = x.shape
    Cout, Cin_w, KH, KW = weight.shape
    assert Cin_w == Cin
    # TODO(synk): groups != 1 and conv bias are not implemented (module defaults).

    Hout = (H + 2 * padding - dilation * (KH - 1) - 1) // stride + 1
    Wout = (W + 2 * padding - dilation * (KW - 1) - 1) // stride + 1
    Hp, Wp = H + 2 * padding, W + 2 * padding
    Hd = Hp - dilation * (KH - 1)        # dense (stride=1) output rows
    Lrow = Hd * Wp                       # dense padded-row output width
    Lpad = _round_up(Lrow, 128)          # lane-dense kernel output width
    M = N * Hout * Wout                  # valid output pixels per channel
    K = KH * KW * Cin

    # ---- cheap JAX glue: zero-pad + flatten (no host-side im2col) ----
    xp = jnp.pad(x, ((0, 0), (0, 0), (padding, padding), (padding, padding)))
    xp_flat = xp.reshape(N, Cin, Hp * Wp)
    max_off = (KH - 1) * dilation * Wp + (KW - 1) * dilation
    Lp = _round_up(max(Hp * Wp, max_off + Lpad), 128)
    if Lp > Hp * Wp:                     # tail zeros: every tap slice in-bounds
        xp_flat = jnp.pad(xp_flat, ((0, 0), (0, 0), (0, Lp - Hp * Wp)))

    w2d = weight.transpose(0, 2, 3, 1).reshape(Cout, K)   # (cout | kh,kw,cin)
    if matmul_dtype is not None:
        xp_flat = xp_flat.astype(matmul_dtype)
        w2d = w2d.astype(matmul_dtype)

    # lanes that correspond to real (strided) output pixels
    l = jnp.arange(Lpad)
    r, c = l // Wp, l % Wp
    valid = ((l < Lrow) & (r % stride == 0) & (r // stride < Hout)
             & (c % stride == 0) & (c // stride < Wout))
    mask = jnp.tile(valid.astype(jnp.float32).reshape(1, Lpad), (1, N))

    gamma2 = gamma.astype(jnp.float32).reshape(Cout, 1)
    beta2 = beta.astype(jnp.float32).reshape(Cout, 1)

    tap_offsets = tuple((kh * dilation) * Wp + kw * dilation
                        for kh in range(KH) for kw in range(KW))

    flops = 2 * Cout * K * N * Lpad + 8 * Cout * N * Lpad
    bytes_accessed = (xp_flat.size * xp_flat.dtype.itemsize
                      + w2d.size * w2d.dtype.itemsize
                      + mask.size * 4 + 4 * Cout * 4
                      + N * Cout * Lpad * x.dtype.itemsize)

    kernel = functools.partial(
        _fused_conv_bn_relu_kernel, n_batch=N, tap_offsets=tap_offsets,
        l_pad=Lpad, m_count=float(M), relu=relu, bn=bn)

    # TODO(synk): for production shapes that overflow VMEM (esp. v7x's 64 MiB)
    # fall back to a two-pass row-tiled design with "parallel" grid axes; at
    # this size one call / one grid step minimizes dispatch + HBM traffic.
    out_p = pl.pallas_call(
        kernel,
        out_shape=jax.ShapeDtypeStruct((N, Cout, Lpad), x.dtype),
        grid=(1,),
        in_specs=[
            pl.BlockSpec((N, Cin, Lp), lambda i: (0, 0, 0)),
            pl.BlockSpec((Cout, K), lambda i: (0, 0)),
            pl.BlockSpec((Cout, 1), lambda i: (0, 0)),
            pl.BlockSpec((Cout, 1), lambda i: (0, 0)),
            pl.BlockSpec((1, N * Lpad), lambda i: (0, 0)),
        ],
        out_specs=pl.BlockSpec((N, Cout, Lpad), lambda i: (0, 0, 0)),
        compiler_params=pltpu.CompilerParams(
            dimension_semantics=("arbitrary",)),
        cost_estimate=pl.CostEstimate(flops=flops, transcendentals=Cout,
                                      bytes_accessed=bytes_accessed),
    )(xp_flat, w2d, gamma2, beta2, mask)

    # strip lane padding, keep every stride-th dense row/col -> NCHW output
    out = out_p[:, :, :Lrow].reshape(N, Cout, Hd, Wp)
    out = out[:, :, ::stride, ::stride][:, :, :Hout, :Wout]
    return out


def ref_basic_conv(x, weight, gamma, beta, *, stride=1, padding=0, dilation=1):
    """Pure-JAX reference (training-mode BatchNorm2d) for correctness checking."""
    y = lax.conv_general_dilated(
        x, weight, (stride, stride),
        [(padding, padding), (padding, padding)],
        rhs_dilation=(dilation, dilation),
        dimension_numbers=("NCHW", "OIHW", "NCHW"),
    )
    mean = y.mean(axis=(0, 2, 3), keepdims=True)
    var = ((y - mean) ** 2).mean(axis=(0, 2, 3), keepdims=True)
    y = (y - mean) / jnp.sqrt(var + EPS)
    y = y * gamma.reshape(1, -1, 1, 1) + beta.reshape(1, -1, 1, 1)
    return jnp.maximum(y, 0.0)


if __name__ == "__main__":
    # BasicConv(in_planes=4, out_planes=8, kernel_size=3, stride=1, padding=1)
    N, Cin, H, W = 2, 4, 16, 16
    Cout, KH, KW = 8, 3, 3
    stride, padding, dilation = 1, 1, 1

    key = jax.random.PRNGKey(0)
    k_x, k_w = jax.random.split(key)
    x = jax.random.normal(k_x, (N, Cin, H, W), dtype=jnp.float32)
    weight = jax.random.normal(k_w, (Cout, Cin, KH, KW), dtype=jnp.float32) * 0.1
    gamma = jnp.ones((Cout,), dtype=jnp.float32)   # PyTorch BN affine init
    beta = jnp.zeros((Cout,), dtype=jnp.float32)

    out = basic_conv(x, weight, gamma, beta,
                     stride=stride, padding=padding, dilation=dilation)
    out = jax.block_until_ready(out)

    ref = ref_basic_conv(x, weight, gamma, beta,
                         stride=stride, padding=padding, dilation=dilation)
    assert out.shape == (N, Cout, H, W)
    err = float(jnp.max(jnp.abs(out - ref)))
    assert jnp.allclose(out, ref, atol=1e-4, rtol=1e-4), err

    print("KERNEL_OK")
</pallas_src>

<mosaic_0001>
module attributes {stable_mosaic.version = 11 : i64} {
  func.func @_fused_conv_bn_relu_kernel(%arg0: i32, %arg1: memref<2x4x512xf32, #tpu.memory_space<vmem>>, %arg2: memref<8x36xf32, #tpu.memory_space<vmem>>, %arg3: memref<8x1xf32, #tpu.memory_space<vmem>>, %arg4: memref<8x1xf32, #tpu.memory_space<vmem>>, %arg5: memref<1x768xf32, #tpu.memory_space<vmem>>, %arg6: memref<2x8x384xf32, #tpu.memory_space<vmem>>) attributes {dimension_semantics = [#tpu.dimension_semantics<arbitrary>], iteration_bounds = array<i64: 1>, scalar_prefetch = 0 : i64, scratch_operands = 0 : i64, tpu.core_type = #tpu.core_type<tc>, window_params = [{pipeline_mode = #tpu.pipeline_mode<synchronous>, transform_indices = @transform_0, window_bounds = array<i64: 2, 4, 512>}, {pipeline_mode = #tpu.pipeline_mode<synchronous>, transform_indices = @transform_1, window_bounds = array<i64: 8, 36>}, {pipeline_mode = #tpu.pipeline_mode<synchronous>, transform_indices = @transform_2, window_bounds = array<i64: 8, 1>}, {pipeline_mode = #tpu.pipeline_mode<synchronous>, transform_indices = @transform_3, window_bounds = array<i64: 8, 1>}, {pipeline_mode = #tpu.pipeline_mode<synchronous>, transform_indices = @transform_4, window_bounds = array<i64: 1, 768>}, {pipeline_mode = #tpu.pipeline_mode<synchronous>, transform_indices = @transform_5, window_bounds = array<i64: 2, 8, 384>}]} {
    %c0 = arith.constant 0 : index
    %c0_0 = arith.constant 0 : index
    %c0_1 = arith.constant 0 : index
    %0 = vector.load %arg1[%c0, %c0_0, %c0_1] : memref<2x4x512xf32, #tpu.memory_space<vmem>>, vector<1x4x384xf32>
    %1 = vector.shape_cast %0 : vector<1x4x384xf32> to vector<4x384xf32>
    %c0_2 = arith.constant 0 : index
    %c0_3 = arith.constant 0 : index
    %c1 = arith.constant 1 : index
    %2 = vector.load %arg1[%c0_2, %c0_3, %c1] : memref<2x4x512xf32, #tpu.memory_space<vmem>>, vector<1x4x384xf32>
    %3 = vector.shape_cast %2 : vector<1x4x384xf32> to vector<4x384xf32>
    %c0_4 = arith.constant 0 : index
    %c0_5 = arith.constant 0 : index
    %c2 = arith.constant 2 : index
    %4 = vector.load %arg1[%c0_4, %c0_5, %c2] : memref<2x4x512xf32, #tpu.memory_space<vmem>>, vector<1x4x384xf32>
    %5 = vector.shape_cast %4 : vector<1x4x384xf32> to vector<4x384xf32>
    %c0_6 = arith.constant 0 : index
    %c0_7 = arith.constant 0 : index
    %c18 = arith.constant 18 : index
    %6 = vector.load %arg1[%c0_6, %c0_7, %c18] : memref<2x4x512xf32, #tpu.memory_space<vmem>>, vector<1x4x384xf32>
    %7 = vector.shape_cast %6 : vector<1x4x384xf32> to vector<4x384xf32>
    %c0_8 = arith.constant 0 : index
    %c0_9 = arith.constant 0 : index
    %c19 = arith.constant 19 : index
    %8 = vector.load %arg1[%c0_8, %c0_9, %c19] : memref<2x4x512xf32, #tpu.memory_space<vmem>>, vector<1x4x384xf32>
    %9 = vector.shape_cast %8 : vector<1x4x384xf32> to vector<4x384xf32>
    %c0_10 = arith.constant 0 : index
    %c0_11 = arith.constant 0 : index
    %c20 = arith.constant 20 : index
    %10 = vector.load %arg1[%c0_10, %c0_11, %c20] : memref<2x4x512xf32, #tpu.memory_space<vmem>>, vector<1x4x384xf32>
    %11 = vector.shape_cast %10 : vector<1x4x384xf32> to vector<4x384xf32>
    %c0_12 = arith.constant 0 : index
    %c0_13 = arith.constant 0 : index
    %c36 = arith.constant 36 : index
    %12 = vector.load %arg1[%c0_12, %c0_13, %c36] : memref<2x4x512xf32, #tpu.memory_space<vmem>>, vector<1x4x384xf32>
    %13 = vector.shape_cast %12 : vector<1x4x384xf32> to vector<4x384xf32>
    %c0_14 = arith.constant 0 : index
    %c0_15 = arith.constant 0 : index
    %c37 = arith.constant 37 : index
    %14 = vector.load %arg1[%c0_14, %c0_15, %c37] : memref<2x4x512xf32, #tpu.memory_space<vmem>>, vector<1x4x384xf32>
    %15 = vector.shape_cast %14 : vector<1x4x384xf32> to vector<4x384xf32>
    %c0_16 = arith.constant 0 : index
    %c0_17 = arith.constant 0 : index
    %c38 = arith.constant 38 : index
    %16 = vector.load %arg1[%c0_16, %c0_17, %c38] : memref<2x4x512xf32, #tpu.memory_space<vmem>>, vector<1x4x384xf32>
    %17 = vector.shape_cast %16 : vector<1x4x384xf32> to vector<4x384xf32>
    %18 = tpu.concatenate %1, %3, %5, %7, %9, %11, %13, %15, %17 in 0 : vector<4x384xf32>, vector<4x384xf32>, vector<4x384xf32>, vector<4x384xf32>, vector<4x384xf32>, vector<4x384xf32>, vector<4x384xf32>, vector<4x384xf32>, vector<4x384xf32> -> vector<36x384xf32>
    %c1_18 = arith.constant 1 : index
    %c0_19 = arith.constant 0 : index
    %c0_20 = arith.constant 0 : index
    %19 = vector.load %arg1[%c1_18, %c0_19, %c0_20] : memref<2x4x512xf32, #tpu.memory_space<vmem>>, vector<1x4x384xf32>
    %20 = vector.shape_cast %19 : vector<1x4x384xf32> to vector<4x384xf32>
    %c1_21 = arith.constant 1 : index
    %c0_22 = arith.constant 0 : index
    %c1_23 = arith.constant 1 : index
    %21 = vector.load %arg1[%c1_21, %c0_22, %c1_23] : memref<2x4x512xf32, #tpu.memory_space<vmem>>, vector<1x4x384xf32>
    %22 = vector.shape_cast %21 : vector<1x4x384xf32> to vector<4x384xf32>
    %c1_24 = arith.constant 1 : index
    %c0_25 = arith.constant 0 : index
    %c2_26 = arith.constant 2 : index
    %23 = vector.load %arg1[%c1_24, %c0_25, %c2_26] : memref<2x4x512xf32, #tpu.memory_space<vmem>>, vector<1x4x384xf32>
    %24 = vector.shape_cast %23 : vector<1x4x384xf32> to vector<4x384xf32>
    %c1_27 = arith.constant 1 : index
    %c0_28 = arith.constant 0 : index
    %c18_29 = arith.constant 18 : index
    %25 = vector.load %arg1[%c1_27, %c0_28, %c18_29] : memref<2x4x512xf32, #tpu.memory_space<vmem>>, vector<1x4x384xf32>
    %26 = vector.shape_cast %25 : vector<1x4x384xf32> to vector<4x384xf32>
    %c1_30 = arith.constant 1 : index
    %c0_31 = arith.constant 0 : index
    %c19_32 = arith.constant 19 : index
    %27 = vector.load %arg1[%c1_30, %c0_31, %c19_32] : memref<2x4x512xf32, #tpu.memory_space<vmem>>, vector<1x4x384xf32>
    %28 = vector.shape_cast %27 : vector<1x4x384xf32> to vector<4x384xf32>
    %c1_33 = arith.constant 1 : index
    %c0_34 = arith.constant 0 : index
    %c20_35 = arith.constant 20 : index
    %29 = vector.load %arg1[%c1_33, %c0_34, %c20_35] : memref<2x4x512xf32, #tpu.memory_space<vmem>>, vector<1x4x384xf32>
    %30 = vector.shape_cast %29 : vector<1x4x384xf32> to vector<4x384xf32>
    %c1_36 = arith.constant 1 : index
    %c0_37 = arith.constant 0 : index
    %c36_38 = arith.constant 36 : index
    %31 = vector.load %arg1[%c1_36, %c0_37, %c36_38] : memref<2x4x512xf32, #tpu.memory_space<vmem>>, vector<1x4x384xf32>
    %32 = vector.shape_cast %31 : vector<1x4x384xf32> to vector<4x384xf32>
    %c1_39 = arith.constant 1 : index
    %c0_40 = arith.constant 0 : index
    %c37_41 = arith.constant 37 : index
    %33 = vector.load %arg1[%c1_39, %c0_40, %c37_41] : memref<2x4x512xf32, #tpu.memory_space<vmem>>, vector<1x4x384xf32>
    %34 = vector.shape_cast %33 : vector<1x4x384xf32> to vector<4x384xf32>
    %c1_42 = arith.constant 1 : index
    %c0_43 = arith.constant 0 : index
    %c38_44 = arith.constant 38 : index
    %35 = vector.load %arg1[%c1_42, %c0_43, %c38_44] : memref<2x4x512xf32, #tpu.memory_space<vmem>>, vector<1x4x384xf32>
    %36 = vector.shape_cast %35 : vector<1x4x384xf32> to vector<4x384xf32>
    %37 = tpu.concatenate %20, %22, %24, %26, %28, %30, %32, %34, %36 in 0 : vector<4x384xf32>, vector<4x384xf32>, vector<4x384xf32>, vector<4x384xf32>, vector<4x384xf32>, vector<4x384xf32>, vector<4x384xf32>, vector<4x384xf32>, vector<4x384xf32> -> vector<36x384xf32>
    %38 = tpu.concatenate %18, %37 in 1 : vector<36x384xf32>, vector<36x384xf32> -> vector<36x768xf32>
    %c0_45 = arith.constant 0 : index
    %c0_46 = arith.constant 0 : index
    %39 = vector.load %arg2[%c0_45, %c0_46] : memref<8x36xf32, #tpu.memory_space<vmem>>, vector<8x36xf32>
    %cst = arith.constant dense<0.000000e+00> : vector<8x768xf32>
    %40 = tpu.matmul %39, %38, %cst {dimension_numbers = #tpu.dot_dimension_numbers<[1], [0], [0], [1], [0, 0, 1, 1], [], []>} : vector<8x36xf32>, vector<36x768xf32>, vector<8x768xf32> -> vector<8x768xf32>
    %c0_47 = arith.constant 0 : index
    %c0_48 = arith.constant 0 : index
    %41 = vector.load %arg5[%c0_47, %c0_48] : memref<1x768xf32, #tpu.memory_space<vmem>>, vector<1x768xf32>
    %42 = vector.broadcast %41 : vector<1x768xf32> to vector<8x768xf32>
    %43 = arith.mulf %40, %42 : vector<8x768xf32>
    %cst_49 = arith.constant dense<0.000000e+00> : vector<8xf32>
    %44 = vector.multi_reduction <add>, %43, %cst_49 [1] : vector<8x768xf32> to vector<8xf32>
    %45 = vector.shape_cast %44 : vector<8xf32> to vector<8x1xf32>
    %cst_50 = arith.constant 0.001953125 : f32
    %46 = vector.broadcast %cst_50 : f32 to vector<8x1xf32>
    %47 = arith.mulf %45, %46 : vector<8x1xf32>
    %48 = vector.broadcast %47 : vector<8x1xf32> to vector<8x768xf32>
    %49 = arith.subf %40, %48 : vector<8x768xf32>
    %50 = vector.broadcast %41 : vector<1x768xf32> to vector<8x768xf32>
    %51 = arith.mulf %49, %50 : vector<8x768xf32>
    %52 = arith.mulf %51, %51 : vector<8x768xf32>
    %cst_51 = arith.constant dense<0.000000e+00> : vector<8xf32>
    %53 = vector.multi_reduction <add>, %52, %cst_51 [1] : vector<8x768xf32> to vector<8xf32>
    %54 = vector.shape_cast %53 : vector<8xf32> to vector<8x1xf32>
    %cst_52 = arith.constant 0.001953125 : f32
    %55 = vector.broadcast %cst_52 : f32 to vector<8x1xf32>
    %56 = arith.mulf %54, %55 : vector<8x1xf32>
    %c0_53 = arith.constant 0 : index
    %c0_54 = arith.constant 0 : index
    %57 = vector.load %arg3[%c0_53, %c0_54] : memref<8x1xf32, #tpu.memory_space<vmem>>, vector<8x1xf32>
    %cst_55 = arith.constant 9.99999974E-6 : f32
    %58 = vector.broadcast %cst_55 : f32 to vector<8x1xf32>
    %59 = arith.addf %56, %58 : vector<8x1xf32>
    %60 = math.rsqrt %59 : vector<8x1xf32>
    %61 = arith.mulf %57, %60 : vector<8x1xf32>
    %c0_56 = arith.constant 0 : index
    %c0_57 = arith.constant 0 : index
    %62 = vector.load %arg4[%c0_56, %c0_57] : memref<8x1xf32, #tpu.memory_space<vmem>>, vector<8x1xf32>
    %63 = arith.mulf %47, %61 : vector<8x1xf32>
    %64 = arith.subf %62, %63 : vector<8x1xf32>
    %65 = vector.broadcast %61 : vector<8x1xf32> to vector<8x768xf32>
    %66 = arith.mulf %40, %65 : vector<8x768xf32>
    %67 = vector.broadcast %64 : vector<8x1xf32> to vector<8x768xf32>
    %68 = arith.addf %66, %67 : vector<8x768xf32>
    %cst_58 = arith.constant 0.000000e+00 : f32
    %69 = vector.broadcast %cst_58 : f32 to vector<8x768xf32>
    %70 = arith.maximumf %68, %69 : vector<8x768xf32>
    %71 = vector.extract_strided_slice %70 {offsets = [0, 0], sizes = [8, 384], strides = [1, 1]} : vector<8x768xf32> to vector<8x384xf32>
    %c0_59 = arith.constant 0 : index
    %c0_60 = arith.constant 0 : index
    %c0_61 = arith.constant 0 : index
    %72 = vector.load %arg6[%c0_59, %c0_60, %c0_61] : memref<2x8x384xf32, #tpu.memory_space<vmem>>, vector<1x8x384xf32>
    %73 = vector.shape_cast %72 : vector<1x8x384xf32> to vector<8x384xf32>
    %74 = vector.shape_cast %71 : vector<8x384xf32> to vector<1x8x384xf32>
    tpu.vector_store %arg6[%c0_59, %c0_60, %c0_61], %74 {strides = array<i32>} : memref<2x8x384xf32, #tpu.memory_space<vmem>>, vector<1x8x384xf32>,
    %75 = vector.extract_strided_slice %70 {offsets = [0, 384], sizes = [8, 384], strides = [1, 1]} : vector<8x768xf32> to vector<8x384xf32>
    %c1_62 = arith.constant 1 : index
    %c0_63 = arith.constant 0 : index
    %c0_64 = arith.constant 0 : index
    %76 = vector.load %arg6[%c1_62, %c0_63, %c0_64] : memref<2x8x384xf32, #tpu.memory_space<vmem>>, vector<1x8x384xf32>
    %77 = vector.shape_cast %76 : vector<1x8x384xf32> to vector<8x384xf32>
    %78 = vector.shape_cast %75 : vector<8x384xf32> to vector<1x8x384xf32>
    tpu.vector_store %arg6[%c1_62, %c0_63, %c0_64], %78 {strides = array<i32>} : memref<2x8x384xf32, #tpu.memory_space<vmem>>, vector<1x8x384xf32>,
    return
  }
  func.func @transform_0(%arg0: i32) -> (i32, i32, i32) {
    %c0_i32 = arith.constant 0 : i32
    %c0_i32_0 = arith.constant 0 : i32
    %c0_i32_1 = arith.constant 0 : i32
    %c0_i32_2 = arith.constant 0 : i32
    return %c0_i32, %c0_i32_0, %c0_i32_1 : i32, i32, i32
  }
  func.func @transform_1(%arg0: i32) -> (i32, i32) {
    %c0_i32 = arith.constant 0 : i32
    %c0_i32_0 = arith.constant 0 : i32
    %c0_i32_1 = arith.constant 0 : i32
    return %c0_i32, %c0_i32_0 : i32, i32
  }
  func.func @transform_2(%arg0: i32) -> (i32, i32) {
    %c0_i32 = arith.constant 0 : i32
    %c0_i32_0 = arith.constant 0 : i32
    %c0_i32_1 = arith.constant 0 : i32
    return %c0_i32, %c0_i32_0 : i32, i32
  }
  func.func @transform_3(%arg0: i32) -> (i32, i32) {
    %c0_i32 = arith.constant 0 : i32
    %c0_i32_0 = arith.constant 0 : i32
    %c0_i32_1 = arith.constant 0 : i32
    return %c0_i32, %c0_i32_0 : i32, i32
  }
  func.func @transform_4(%arg0: i32) -> (i32, i32) {
    %c0_i32 = arith.constant 0 : i32
    %c0_i32_0 = arith.constant 0 : i32
    %c0_i32_1 = arith.constant 0 : i32
    return %c0_i32, %c0_i32_0 : i32, i32
  }
  func.func @transform_5(%arg0: i32) -> (i32, i32, i32) {
    %c0_i32 = arith.constant 0 : i32
    %c0_i32_0 = arith.constant 0 : i32
    %c0_i32_1 = arith.constant 0 : i32
    %c0_i32_2 = arith.constant 0 : i32
    return %c0_i32, %c0_i32_0, %c0_i32_1 : i32, i32, i32
  }
}

</mosaic_0001>

<llo_original>
// kernel: tpu_custom_call.1
$region0: #{tpu_custom_call.1}
  #allocation0 [shape = 'u32[]', space=smem, size = 0x4, offset = 0x4, fixed_abs, tag = 'smem constant byte address 0x4 - core index']
  #allocation1 [shape = 'u32[144,128]{1,0:T(1,128)}', space=vmem, size = 0x12000, scoped, tag = 'internal scratch']
  %s0 = inlined_call_operand.hbm [shape: f32[2,4,512], index: 0, kind: input, shape index: {}]
  %s1 = inlined_call_operand.vmem [shape: f32[8,36], index: 1, kind: input, shape index: {}]
  %s2 = inlined_call_operand.vmem [shape: f32[8,1], index: 2, kind: input, shape index: {}]
  %s3 = inlined_call_operand.vmem [shape: f32[8,1], index: 3, kind: input, shape index: {}]
  %s4 = inlined_call_operand.vmem [shape: f32[1,768], index: 4, kind: input, shape index: {}]
  %s5 = inlined_call_operand.hbm [shape: f32[2,8,384], index: 5, kind: output, shape index: {}]
  %s6 = sld [smem:[#allocation0]]
  $region34: #{tpu_custom_call.1} parent=0
    _
  %s8 = ssub.s32 1, %s6
  %s9 = scalar_select 0, %s8, %s6
  $region1: #{tpu_custom_call.1} parent=0
    #allocation2 [shape = 'u8[16384]{0}', space=vmem, size = 0x4000, scoped, tag = 'input window, operand 0, single buffered']
    #allocation3 [shape = 's32[1]{0}', space=sflag, size = 0x4, scoped, tag = 'scoped memory for tpu_custom_call.1']
    #allocation4 [shape = 's32[1]{0}', space=sflag, size = 0x4, scoped, tag = 'scoped memory for tpu_custom_call.1']
    #allocation5 [shape = 'u8[24576]{0}', space=vmem, size = 0x6000, scoped, tag = 'output window, operand 0, single buffered']
    %10 = vsyncpa [#allocation3], 0
    %11 = vsyncpa [#allocation4], 0
    // Predicated region
    $region2: #{tpu_custom_call.1} parent=1 // pred_check
      _
    $region3: #{tpu_custom_call.1} parent=1 // pred_check_branch
      %13 = sbr.rel (0) target = $region5
    $region4: #{tpu_custom_call.1} parent=1 // pred_region
      %s15 = ssub.s32 512, 512
      %16 = vsyncadd [#allocation3], %s15
      %s17 = sshll.u32 [#allocation2], 4
      %s18 = int_to_ptr.vmem [resolvable:$true] %s17
      %23 = dma.hbm_to_vmem [thread:$0]  %s0, 512, %s18, [#allocation3], 256, 256, 16
    $region5: #{tpu_custom_call.1} parent=1 // pred_fallthru
      _
    // Predicated region
    $region6: #{tpu_custom_call.1} parent=1 // pred_check
      _
    $region7: #{tpu_custom_call.1} parent=1 // pred_check_branch
      %25 = sbr.rel (0) target = $region9
    $region8: #{tpu_custom_call.1} parent=1 // pred_region
      _
    $region9: #{tpu_custom_call.1} parent=1 // pred_fallthru
      _
    // Predicated region
    $region10: #{tpu_custom_call.1} parent=1 // pred_check
      _
    $region11: #{tpu_custom_call.1} parent=1 // pred_check_branch
      %27 = sbr.rel (0) target = $region13
    $region12: #{tpu_custom_call.1} parent=1 // pred_region
      _
    $region13: #{tpu_custom_call.1} parent=1 // pred_fallthru
      _
    // Predicated region
    $region14: #{tpu_custom_call.1} parent=1 // pred_check
      _
    $region15: #{tpu_custom_call.1} parent=1 // pred_check_branch
      %29 = sbr.rel (0) target = $region17
    $region16: #{tpu_custom_call.1} parent=1 // pred_region
      _
    $region17: #{tpu_custom_call.1} parent=1 // pred_fallthru
      _
    // Predicated region
    $region18: #{tpu_custom_call.1} parent=1 // pred_check
      _
    $region19: #{tpu_custom_call.1} parent=1 // pred_check_branch
      %31 = sbr.rel (0) target = $region21
    $region20: #{tpu_custom_call.1} parent=1 // pred_region
      _
    $region21: #{tpu_custom_call.1} parent=1 // pred_fallthru
      _
    // Predicated region
    $region22: #{tpu_custom_call.1} parent=1 // pred_check
      _
    $region23: #{tpu_custom_call.1} parent=1 // pred_check_branch
      %33 = sbr.rel (0) target = $region25
    $region24: #{tpu_custom_call.1} parent=1 // pred_region
      %34 = dma.done [#allocation3], 512
    $region25: #{tpu_custom_call.1} parent=1 // pred_fallthru
      _
    %v35 = vld [vmem:[#allocation2] sm:$0xff]
    %v36 = vld [vmem:[#allocation2 + $0x8] sm:$0xf]
    %v37 = vld [vmem:[#allocation2 + $0x8] sm:$0xff]
    %v39 = vcombine.high %v35, %v35
    %v42 = vcombine.low %v35, %v35
    %v43 = vcombine.low %v37, %v37
    %44 = vrot.lane.b32.xlu0 %v42, 127
    %v45 = vpop.permute.xlu0 %44
    %46 = vrot.lane.b32.xlu0 %v35, 127
    %v47 = vpop.permute.xlu0 %46
    %48 = vrot.lane.b32.xlu0 %v43, 127
    %v49 = vpop.permute.xlu0 %48
    %50 = vrot.lane.b32.xlu0 %v37, 127
    %v51 = vpop.permute.xlu0 %50
    %vm52 = vcmask 1039360
    %v53 = vsel %vm52, %v45, %v47
    %v54 = vsel %vm52, %v47, %v49
    %v55 = vsel %vm52, %v49, %v51
    %v59 = vcombine.high %v37, %v37
    %60 = vrot.lane.b32.xlu0 %v35, 126
    %v61 = vpop.permute.xlu0 %60
    %62 = vrot.lane.b32.xlu0 %v39, 126
    %v63 = vpop.permute.xlu0 %62
    %64 = vrot.lane.b32.xlu0 %v37, 126
    %v65 = vpop.permute.xlu0 %64
    %66 = vrot.lane.b32.xlu0 %v59, 126
    %v67 = vpop.permute.xlu0 %66
    %vm68 = vcmask 1031168
    %v69 = vsel %vm68, %v61, %v63
    %v70 = vsel %vm68, %v63, %v65
    %v71 = vsel %vm68, %v65, %v67
    %75 = vrot.lane.b32.xlu0 %v42, 110
    %v76 = vpop.permute.xlu0 %75
    %77 = vrot.lane.b32.xlu0 %v35, 110
    %v78 = vpop.permute.xlu0 %77
    %79 = vrot.lane.b32.xlu0 %v43, 110
    %v80 = vpop.permute.xlu0 %79
    %81 = vrot.lane.b32.xlu0 %v37, 110
    %v82 = vpop.permute.xlu0 %81
    %vm83 = vcmask 900096
    %v84 = vsel %vm83, %v76, %v78
    %v85 = vsel %vm83, %v78, %v80
    %v86 = vsel %vm83, %v80, %v82
    %90 = vrot.lane.b32.xlu0 %v35, 109
    %v91 = vpop.permute.xlu0 %90
    %92 = vrot.lane.b32.xlu0 %v39, 109
    %v93 = vpop.permute.xlu0 %92
    %94 = vrot.lane.b32.xlu0 %v37, 109
    %v95 = vpop.permute.xlu0 %94
    %96 = vrot.lane.b32.xlu0 %v59, 109
    %v97 = vpop.permute.xlu0 %96
    %vm98 = vcmask 891904
    %v99 = vsel %vm98, %v91, %v93
    %v100 = vsel %vm98, %v93, %v95
    %v101 = vsel %vm98, %v95, %v97
    %105 = vrot.lane.b32.xlu0 %v42, 108
    %v106 = vpop.permute.xlu0 %105
    %107 = vrot.lane.b32.xlu0 %v35, 108
    %v108 = vpop.permute.xlu0 %107
    %109 = vrot.lane.b32.xlu0 %v43, 108
    %v110 = vpop.permute.xlu0 %109
    %111 = vrot.lane.b32.xlu0 %v37, 108
    %v112 = vpop.permute.xlu0 %111
    %vm113 = vcmask 883712
    %v114 = vsel %vm113, %v106, %v108
    %v115 = vsel %vm113, %v108, %v110
    %v116 = vsel %vm113, %v110, %v112
    %120 = vrot.lane.b32.xlu0 %v35, 92
    %v121 = vpop.permute.xlu0 %120
    %122 = vrot.lane.b32.xlu0 %v39, 92
    %v123 = vpop.permute.xlu0 %122
    %124 = vrot.lane.b32.xlu0 %v37, 92
    %v125 = vpop.permute.xlu0 %124
    %126 = vrot.lane.b32.xlu0 %v59, 92
    %v127 = vpop.permute.xlu0 %126
    %vm128 = vcmask 752640
    %v129 = vsel %vm128, %v121, %v123
    %v130 = vsel %vm128, %v123, %v125
    %v131 = vsel %vm128, %v125, %v127
    %135 = vrot.lane.b32.xlu0 %v42, 91
    %v136 = vpop.permute.xlu0 %135
    %137 = vrot.lane.b32.xlu0 %v35, 91
    %v138 = vpop.permute.xlu0 %137
    %139 = vrot.lane.b32.xlu0 %v43, 91
    %v140 = vpop.permute.xlu0 %139
    %141 = vrot.lane.b32.xlu0 %v37, 91
    %v142 = vpop.permute.xlu0 %141
    %vm143 = vcmask 744448
    %v144 = vsel %vm143, %v136, %v138
    %v145 = vsel %vm143, %v138, %v140
    %v146 = vsel %vm143, %v140, %v142
    %150 = vrot.lane.b32.xlu0 %v35, 90
    %v151 = vpop.permute.xlu0 %150
    %152 = vrot.lane.b32.xlu0 %v39, 90
    %v153 = vpop.permute.xlu0 %152
    %154 = vrot.lane.b32.xlu0 %v37, 90
    %v155 = vpop.permute.xlu0 %154
    %156 = vrot.lane.b32.xlu0 %v59, 90
    %v157 = vpop.permute.xlu0 %156
    %vm158 = vcmask 736256
    %v159 = vsel %vm158, %v151, %v153
    %v160 = vsel %vm158, %v153, %v155
    %v161 = vsel %vm158, %v155, %v157
    %vm162 = vcmask 1043456
    %v163 = vsel %vm162, %v35, %v53
    %v164 = vsel %vm162, %v39, %v54
    %v165 = vsel %vm162, %v36, %v55
    %v166 = vsel %vm162, %v69, %v84
    %v167 = vsel %vm162, %v70, %v85
    %v168 = vsel %vm162, %v71, %v86
    %v169 = vsel %vm162, %v99, %v114
    %v170 = vsel %vm162, %v100, %v115
    %v171 = vsel %vm162, %v101, %v116
    %v172 = vsel %vm162, %v129, %v144
    %v173 = vsel %vm162, %v130, %v145
    %v174 = vsel %vm162, %v131, %v146
    %s175 = scalar_lea.vmem [#allocation2], 16
    %v176 = vld [vmem:[%s175] sm:$0xff]
    %v177 = vld [vmem:[%s175 + $0x8] sm:$0xf]
    %v178 = vld [vmem:[%s175 + $0x8] sm:$0xff]
    %v180 = vcombine.high %v176, %v176
    %v183 = vcombine.low %v176, %v176
    %v184 = vcombine.low %v178, %v178
    %185 = vrot.lane.b32.xlu0 %v183, 127
    %v186 = vpop.permute.xlu0 %185
    %187 = vrot.lane.b32.xlu0 %v176, 127
    %v188 = vpop.permute.xlu0 %187
    %189 = vrot.lane.b32.xlu0 %v184, 127
    %v190 = vpop.permute.xlu0 %189
    %191 = vrot.lane.b32.xlu0 %v178, 127
    %v192 = vpop.permute.xlu0 %191
    %v193 = vsel %vm52, %v186, %v188
    %v194 = vsel %vm52, %v188, %v190
    %v195 = vsel %vm52, %v190, %v192
    %v199 = vcombine.high %v178, %v178
    %200 = vrot.lane.b32.xlu0 %v176, 126
    %v201 = vpop.permute.xlu0 %200
    %202 = vrot.lane.b32.xlu0 %v180, 126
    %v203 = vpop.permute.xlu0 %202
    %204 = vrot.lane.b32.xlu0 %v178, 126
    %v205 = vpop.permute.xlu0 %204
    %206 = vrot.lane.b32.xlu0 %v199, 126
    %v207 = vpop.permute.xlu0 %206
    %v208 = vsel %vm68, %v201, %v203
    %v209 = vsel %vm68, %v203, %v205
    %v210 = vsel %vm68, %v205, %v207
    %214 = vrot.lane.b32.xlu0 %v183, 110
    %v215 = vpop.permute.xlu0 %214
    %216 = vrot.lane.b32.xlu0 %v176, 110
    %v217 = vpop.permute.xlu0 %216
    %218 = vrot.lane.b32.xlu0 %v184, 110
    %v219 = vpop.permute.xlu0 %218
    %220 = vrot.lane.b32.xlu0 %v178, 110
    %v221 = vpop.permute.xlu0 %220
    %v222 = vsel %vm83, %v215, %v217
    %v223 = vsel %vm83, %v217, %v219
    %v224 = vsel %vm83, %v219, %v221
    %228 = vrot.lane.b32.xlu0 %v176, 109
    %v229 = vpop.permute.xlu0 %228
    %230 = vrot.lane.b32.xlu0 %v180, 109
    %v231 = vpop.permute.xlu0 %230
    %232 = vrot.lane.b32.xlu0 %v178, 109
    %v233 = vpop.permute.xlu0 %232
    %234 = vrot.lane.b32.xlu0 %v199, 109
    %v235 = vpop.permute.xlu0 %234
    %v236 = vsel %vm98, %v229, %v231
    %v237 = vsel %vm98, %v231, %v233
    %v238 = vsel %vm98, %v233, %v235
    %242 = vrot.lane.b32.xlu0 %v183, 108
    %v243 = vpop.permute.xlu0 %242
    %244 = vrot.lane.b32.xlu0 %v176, 108
    %v245 = vpop.permute.xlu0 %244
    %246 = vrot.lane.b32.xlu0 %v184, 108
    %v247 = vpop.permute.xlu0 %246
    %248 = vrot.lane.b32.xlu0 %v178, 108
    %v249 = vpop.permute.xlu0 %248
    %v250 = vsel %vm113, %v243, %v245
    %v251 = vsel %vm113, %v245, %v247
    %v252 = vsel %vm113, %v247, %v249
    %256 = vrot.lane.b32.xlu0 %v176, 92
    %v257 = vpop.permute.xlu0 %256
    %258 = vrot.lane.b32.xlu0 %v180, 92
    %v259 = vpop.permute.xlu0 %258
    %260 = vrot.lane.b32.xlu0 %v178, 92
    %v261 = vpop.permute.xlu0 %260
    %262 = vrot.lane.b32.xlu0 %v199, 92
    %v263 = vpop.permute.xlu0 %262
    %v264 = vsel %vm128, %v257, %v259
    %v265 = vsel %vm128, %v259, %v261
    %v266 = vsel %vm128, %v261, %v263
    %270 = vrot.lane.b32.xlu0 %v183, 91
    %v271 = vpop.permute.xlu0 %270
    %272 = vrot.lane.b32.xlu0 %v176, 91
    %v273 = vpop.permute.xlu0 %272
    %274 = vrot.lane.b32.xlu0 %v184, 91
    %v275 = vpop.permute.xlu0 %274
    %276 = vrot.lane.b32.xlu0 %v178, 91
    %v277 = vpop.permute.xlu0 %276
    %v278 = vsel %vm143, %v271, %v273
    %v279 = vsel %vm143, %v273, %v275
    %v280 = vsel %vm143, %v275, %v277
    %284 = vrot.lane.b32.xlu0 %v176, 90
    %v285 = vpop.permute.xlu0 %284
    %286 = vrot.lane.b32.xlu0 %v180, 90
    %v287 = vpop.permute.xlu0 %286
    %288 = vrot.lane.b32.xlu0 %v178, 90
    %v289 = vpop.permute.xlu0 %288
    %290 = vrot.lane.b32.xlu0 %v199, 90
    %v291 = vpop.permute.xlu0 %290
    %v292 = vsel %vm158, %v285, %v287
    %v293 = vsel %vm158, %v287, %v289
    %v294 = vsel %vm158, %v289, %v291
    %v295 = vsel %vm162, %v176, %v193
    %v296 = vsel %vm162, %v180, %v194
    %v297 = vsel %vm162, %v177, %v195
    %v298 = vsel %vm162, %v208, %v222
    %v299 = vsel %vm162, %v209, %v223
    %v300 = vsel %vm162, %v210, %v224
    %v301 = vsel %vm162, %v236, %v250
    %v302 = vsel %vm162, %v237, %v251
    %v303 = vsel %vm162, %v238, %v252
    %v304 = vsel %vm162, %v264, %v278
    %v305 = vsel %vm162, %v265, %v279
    %v306 = vsel %vm162, %v266, %v280
    %v307 = vld [vmem:[%s1] sm:$0xff]
    %vm308 = vcmask 293888
    %v310 = vsel %vm308, %v307, 0
    %v312 = vsel %vm162, %v159, 0
    %v314 = vsel %vm162, %v160, 0
    %v316 = vsel %vm162, %v161, 0
    %v318 = vsel %vm162, %v292, 0
    %v320 = vsel %vm162, %v293, 0
    %v322 = vsel %vm162, %v294, 0
    %324 = vmatprep.subr.mxu0 0.0
    %325 = vmatpush1.msra.mxu0 0.0
    %326 = vmatprep.subr.mxu0 0.0
    %327 = vmatpush1.msra.mxu0 0.0
    %328 = vmatprep.subr.mxu0 0.0
    %329 = vmatpush1.msra.mxu0 0.0
    %330 = vmatprep.subr.mxu0 0.0
    %331 = vmatpush1.msra.mxu0 0.0
    %332 = vmatprep.subr.mxu0 0.0
    %333 = vmatpush1.msra.mxu0 0.0
    %334 = vmatprep.subr.mxu0 0.0
    %335 = vmatpush1.msra.mxu0 0.0
    %336 = vmatprep.subr.mxu0 0.0
    %337 = vmatpush1.msra.mxu0 0.0
    %338 = vmatprep.subr.mxu0 0.0
    %339 = vmatpush1.msra.mxu0 0.0
    %340 = vmatprep.subr.mxu0 0.0
    %341 = vmatpush1.msra.mxu0 0.0
    %342 = vmatprep.subr.mxu0 0.0
    %343 = vmatpush1.msra.mxu0 0.0
    %344 = vmatprep.subr.mxu0 0.0
    %345 = vmatpush1.msra.mxu0 0.0
    %346 = vmatprep.subr.mxu0 %v314
    %347 = vmatpush1.msra.mxu0 %v312
    %348 = vmatprep.subr.mxu0 %v173
    %349 = vmatpush1.msra.mxu0 %v172
    %350 = vmatprep.subr.mxu0 %v170
    %351 = vmatpush1.msra.mxu0 %v169
    %352 = vmatprep.subr.mxu0 %v167
    %353 = vmatpush1.msra.mxu0 %v166
    %354 = vmatprep.subr.mxu0 %v164
    %355 = vmatpush1.msra.mxu0 %v163
    %356 = vmatprep.subr.mxu0 0.0
    %357 = vmatpush2.msra.mxu0 0.0
    %358 = vmatprep.subr.mxu0 0.0
    %359 = vmatpush2.msra.mxu0 0.0
    %360 = vmatprep.subr.mxu0 0.0
    %361 = vmatpush2.msra.mxu0 0.0
    %362 = vmatprep.subr.mxu0 0.0
    %363 = vmatpush2.msra.mxu0 0.0
    %364 = vmatprep.subr.mxu0 0.0
    %365 = vmatpush2.msra.mxu0 0.0
    %366 = vmatprep.subr.mxu0 0.0
    %367 = vmatpush2.msra.mxu0 0.0
    %368 = vmatprep.subr.mxu0 0.0
    %369 = vmatpush2.msra.mxu0 0.0
    %370 = vmatprep.subr.mxu0 0.0
    %371 = vmatpush2.msra.mxu0 0.0
    %372 = vmatprep.subr.mxu0 0.0
    %373 = vmatpush2.msra.mxu0 0.0
    %374 = vmatprep.subr.mxu0 0.0
    %375 = vmatpush2.msra.mxu0 0.0
    %376 = vmatprep.subr.mxu0 0.0
    %377 = vmatpush2.msra.mxu0 0.0
    %378 = vmatprep.subr.mxu0 0.0
    %379 = vmatpush2.msra.mxu0 0.0
    %380 = vmatprep.subr.mxu0 0.0
    %381 = vmatpush2.msra.mxu0 0.0
    %382 = vmatprep.subr.mxu0 0.0
    %383 = vmatpush2.msra.mxu0 0.0
    %384 = vmatprep.subr.mxu0 0.0
    %385 = vmatpush2.msra.mxu0 0.0
    %386 = vmatprep.subr.mxu0 0.0
    %387 = vmatpush2.msra.mxu0 0.0
    %388 = vmatprep.mubr.f32.mxu0 0.0
    %389 = vmatmul.mubr.f32.gmra.mxu0 %v310
    %v390 = vpop.f32.mrf.mxu0
    %v391 = vadd.f32 0.0, %v390
    %v392 = vpop.f32.mrf.mxu0
    %v393 = vadd.f32 0.0, %v392
    %394 = vdwg.mxu0
    %395 = vmatprep.subr.mxu0 0.0
    %396 = vmatpush1.msra.mxu0 0.0
    %397 = vmatprep.subr.mxu0 0.0
    %398 = vmatpush1.msra.mxu0 0.0
    %399 = vmatprep.subr.mxu0 0.0
    %400 = vmatpush1.msra.mxu0 0.0
    %401 = vmatprep.subr.mxu0 0.0
    %402 = vmatpush1.msra.mxu0 0.0
    %403 = vmatprep.subr.mxu0 0.0
    %404 = vmatpush1.msra.mxu0 0.0
    %405 = vmatprep.subr.mxu0 0.0
    %406 = vmatpush1.msra.mxu0 0.0
    %407 = vmatprep.subr.mxu0 0.0
    %408 = vmatpush1.msra.mxu0 0.0
    %409 = vmatprep.subr.mxu0 0.0
    %410 = vmatpush1.msra.mxu0 0.0
    %411 = vmatprep.subr.mxu0 0.0
    %412 = vmatpush1.msra.mxu0 0.0
    %413 = vmatprep.subr.mxu0 0.0
    %414 = vmatpush1.msra.mxu0 0.0
    %415 = vmatprep.subr.mxu0 0.0
    %416 = vmatpush1.msra.mxu0 0.0
    %417 = vmatprep.subr.mxu0 %v318
    %418 = vmatpush1.msra.mxu0 %v316
    %419 = vmatprep.subr.mxu0 %v304
    %420 = vmatpush1.msra.mxu0 %v174
    %421 = vmatprep.subr.mxu0 %v301
    %422 = vmatpush1.msra.mxu0 %v171
    %423 = vmatprep.subr.mxu0 %v298
    %424 = vmatpush1.msra.mxu0 %v168
    %425 = vmatprep.subr.mxu0 %v295
    %426 = vmatpush1.msra.mxu0 %v165
    %427 = vmatprep.subr.mxu0 0.0
    %428 = vmatpush2.msra.mxu0 0.0
    %429 = vmatprep.subr.mxu0 0.0
    %430 = vmatpush2.msra.mxu0 0.0
    %431 = vmatprep.subr.mxu0 0.0
    %432 = vmatpush2.msra.mxu0 0.0
    %433 = vmatprep.subr.mxu0 0.0
    %434 = vmatpush2.msra.mxu0 0.0
    %435 = vmatprep.subr.mxu0 0.0
    %436 = vmatpush2.msra.mxu0 0.0
    %437 = vmatprep.subr.mxu0 0.0
    %438 = vmatpush2.msra.mxu0 0.0
    %439 = vmatprep.subr.mxu0 0.0
    %440 = vmatpush2.msra.mxu0 0.0
    %441 = vmatprep.subr.mxu0 0.0
    %442 = vmatpush2.msra.mxu0 0.0
    %443 = vmatprep.subr.mxu0 0.0
    %444 = vmatpush2.msra.mxu0 0.0
    %445 = vmatprep.subr.mxu0 0.0
    %446 = vmatpush2.msra.mxu0 0.0
    %447 = vmatprep.subr.mxu0 0.0
    %448 = vmatpush2.msra.mxu0 0.0
    %449 = vmatprep.subr.mxu0 0.0
    %450 = vmatpush2.msra.mxu0 0.0
    %451 = vmatprep.subr.mxu0 0.0
    %452 = vmatpush2.msra.mxu0 0.0
    %453 = vmatprep.subr.mxu0 0.0
    %454 = vmatpush2.msra.mxu0 0.0
    %455 = vmatprep.subr.mxu0 0.0
    %456 = vmatpush2.msra.mxu0 0.0
    %457 = vmatprep.subr.mxu0 0.0
    %458 = vmatpush2.msra.mxu0 0.0
    %459 = vmatprep.mubr.f32.mxu0 0.0
    %460 = vmatmul.mubr.f32.gmra.mxu0 %v310
    %v461 = vpop.f32.mrf.mxu0
    %v462 = vadd.f32 0.0, %v461
    %v463 = vpop.f32.mrf.mxu0
    %v464 = vadd.f32 0.0, %v463
    %465 = vdwg.mxu0
    %466 = vmatprep.subr.mxu0 0.0
    %467 = vmatpush1.msra.mxu0 0.0
    %468 = vmatprep.subr.mxu0 0.0
    %469 = vmatpush1.msra.mxu0 0.0
    %470 = vmatprep.subr.mxu0 0.0
    %471 = vmatpush1.msra.mxu0 0.0
    %472 = vmatprep.subr.mxu0 0.0
    %473 = vmatpush1.msra.mxu0 0.0
    %474 = vmatprep.subr.mxu0 0.0
    %475 = vmatpush1.msra.mxu0 0.0
    %476 = vmatprep.subr.mxu0 0.0
    %477 = vmatpush1.msra.mxu0 0.0
    %478 = vmatprep.subr.mxu0 0.0
    %479 = vmatpush1.msra.mxu0 0.0
    %480 = vmatprep.subr.mxu0 0.0
    %481 = vmatpush1.msra.mxu0 0.0
    %482 = vmatprep.subr.mxu0 0.0
    %483 = vmatpush1.msra.mxu0 0.0
    %484 = vmatprep.subr.mxu0 0.0
    %485 = vmatpush1.msra.mxu0 0.0
    %486 = vmatprep.subr.mxu0 0.0
    %487 = vmatpush1.msra.mxu0 0.0
    %488 = vmatprep.subr.mxu0 %v322
    %489 = vmatpush1.msra.mxu0 %v320
    %490 = vmatprep.subr.mxu0 %v306
    %491 = vmatpush1.msra.mxu0 %v305
    %492 = vmatprep.subr.mxu0 %v303
    %493 = vmatpush1.msra.mxu0 %v302
    %494 = vmatprep.subr.mxu0 %v300
    %495 = vmatpush1.msra.mxu0 %v299
    %496 = vmatprep.subr.mxu0 %v297
    %497 = vmatpush1.msra.mxu0 %v296
    %498 = vmatprep.subr.mxu0 0.0
    %499 = vmatpush2.msra.mxu0 0.0
    %500 = vmatprep.subr.mxu0 0.0
    %501 = vmatpush2.msra.mxu0 0.0
    %502 = vmatprep.subr.mxu0 0.0
    %503 = vmatpush2.msra.mxu0 0.0
    %504 = vmatprep.subr.mxu0 0.0
    %505 = vmatpush2.msra.mxu0 0.0
    %506 = vmatprep.subr.mxu0 0.0
    %507 = vmatpush2.msra.mxu0 0.0
    %508 = vmatprep.subr.mxu0 0.0
    %509 = vmatpush2.msra.mxu0 0.0
    %510 = vmatprep.subr.mxu0 0.0
    %511 = vmatpush2.msra.mxu0 0.0
    %512 = vmatprep.subr.mxu0 0.0
    %513 = vmatpush2.msra.mxu0 0.0
    %514 = vmatprep.subr.mxu0 0.0
    %515 = vmatpush2.msra.mxu0 0.0
    %516 = vmatprep.subr.mxu0 0.0
    %517 = vmatpush2.msra.mxu0 0.0
    %518 = vmatprep.subr.mxu0 0.0
    %519 = vmatpush2.msra.mxu0 0.0
    %520 = vmatprep.subr.mxu0 0.0
    %521 = vmatpush2.msra.mxu0 0.0
    %522 = vmatprep.subr.mxu0 0.0
    %523 = vmatpush2.msra.mxu0 0.0
    %524 = vmatprep.subr.mxu0 0.0
    %525 = vmatpush2.msra.mxu0 0.0
    %526 = vmatprep.subr.mxu0 0.0
    %527 = vmatpush2.msra.mxu0 0.0
    %528 = vmatprep.subr.mxu0 0.0
    %529 = vmatpush2.msra.mxu0 0.0
    %530 = vmatprep.mubr.f32.mxu0 0.0
    %531 = vmatmul.mubr.f32.gmra.mxu0 %v310
    %v532 = vpop.f32.mrf.mxu0
    %v533 = vadd.f32 0.0, %v532
    %v534 = vpop.f32.mrf.mxu0
    %v535 = vadd.f32 0.0, %v534
    %536 = vdwg.mxu0
    %v537 = vld [vmem:[%s4] sm:$0x3f]
    %v539 = vlaneseq
    %v540 = vshrl.u32 %v539, 7
    %v541 = vsub.s32 0, %v540
    %v542 = vrot.slane %v537, %v541
    %v543 = vlaneseq
    %v544 = vshrl.u32 %v543, 7
    %v545 = vsub.s32 1, %v544
    %v546 = vrot.slane %v537, %v545
    %v547 = vlaneseq
    %v548 = vshrl.u32 %v547, 7
    %v549 = vsub.s32 2, %v548
    %v550 = vrot.slane %v537, %v549
    %v551 = vlaneseq
    %v552 = vshrl.u32 %v551, 7
    %v553 = vsub.s32 3, %v552
    %v554 = vrot.slane %v537, %v553
    %v555 = vlaneseq
    %v556 = vshrl.u32 %v555, 7
    %v557 = vsub.s32 4, %v556
    %v558 = vrot.slane %v537, %v557
    %v559 = vlaneseq
    %v560 = vshrl.u32 %v559, 7
    %v561 = vsub.s32 5, %v560
    %v562 = vrot.slane %v537, %v561
    %v569 = vmul.f32 %v391, %v542
    %v570 = vmul.f32 %v393, %v546
    %v571 = vmul.f32 %v462, %v550
    %v572 = vmul.f32 %v464, %v554
    %v573 = vmul.f32 %v533, %v558
    %v574 = vmul.f32 %v535, %v562
    %v575 = vadd.f32 %v569, %v570
    %v576 = vadd.f32 %v575, %v571
    %v577 = vadd.f32 %v576, %v572
    %v578 = vadd.f32 %v577, %v573
    %v579 = vadd.f32 %v578, %v574
    %580 = vadd.xlane.f32.xlu0 %v579
    %v581 = vpop.xlane.xlu0 %580
    %v582 = vmul.f32 %v581, 0.001953125
    %v583 = vsub.f32 %v391, %v582
    %v584 = vsub.f32 %v393, %v582
    %v585 = vsub.f32 %v462, %v582
    %v586 = vsub.f32 %v464, %v582
    %v587 = vsub.f32 %v533, %v582
    %v588 = vsub.f32 %v535, %v582
    %v589 = vmul.f32 %v583, %v542
    %v590 = vmul.f32 %v584, %v546
    %v591 = vmul.f32 %v585, %v550
    %v592 = vmul.f32 %v586, %v554
    %v593 = vmul.f32 %v587, %v558
    %v594 = vmul.f32 %v588, %v562
    %v595 = vmul.f32 %v589, %v589
    %v596 = vmul.f32 %v590, %v590
    %v597 = vmul.f32 %v591, %v591
    %v598 = vmul.f32 %v592, %v592
    %v599 = vmul.f32 %v593, %v593
    %v600 = vmul.f32 %v594, %v594
    %v601 = vadd.f32 %v595, %v596
    %v602 = vadd.f32 %v601, %v597
    %v603 = vadd.f32 %v602, %v598
    %v604 = vadd.f32 %v603, %v599
    %v605 = vadd.f32 %v604, %v600
    %606 = vadd.xlane.f32.xlu0 %v605
    %v607 = vpop.xlane.xlu0 %606
    %v608 = vmul.f32 %v607, 0.001953125
    %v609 = vld [vmem:[%s2] sm:$0xff]
    %v610 = vadd.f32 %v608, 1e-05
    %v611 = vrsqrt.pop %v610
    %v612 = vmul.f32 %v609, %v611
    %v613 = vld [vmem:[%s3] sm:$0xff]
    %v614 = vmul.f32 %v582, %v612
    %v615 = vsub.f32 %v613, %v614
    %617 = vset.pattern.permute.xlu0 0
    %618 = vperm.xlu0 %617, %v612
    %v619 = vpop.permute.xlu0 %618
    %v621 = vmul.f32 %v391, %v619
    %v622 = vmul.f32 %v393, %v619
    %v623 = vmul.f32 %v462, %v619
    %v624 = vmul.f32 %v464, %v619
    %v625 = vmul.f32 %v533, %v619
    %v626 = vmul.f32 %v535, %v619
    %628 = vset.pattern.permute.xlu0 0
    %629 = vperm.xlu0 %628, %v615
    %v630 = vpop.permute.xlu0 %629
    %v632 = vadd.f32 %v621, %v630
    %v633 = vadd.f32 %v622, %v630
    %v634 = vadd.f32 %v623, %v630
    %v635 = vadd.f32 %v624, %v630
    %v636 = vadd.f32 %v625, %v630
    %v637 = vadd.f32 %v626, %v630
    %v638 = vmax.f32 %v632, 0.0
    %v639 = vmax.f32 %v633, 0.0
    %v640 = vmax.f32 %v634, 0.0
    %v641 = vmax.f32 %v635, 0.0
    %v642 = vmax.f32 %v636, 0.0
    %v643 = vmax.f32 %v637, 0.0
    %644 = vst [vmem:[#allocation5] sm:$0xff] %v638
    %645 = vst [vmem:[#allocation5 + $0x8] sm:$0xff] %v639
    %646 = vst [vmem:[#allocation5 + $0x10] sm:$0xff] %v640
    %s647 = scalar_lea.vmem [#allocation5], 24
    %648 = vst [vmem:[%s647] sm:$0xff] %v641
    %649 = vst [vmem:[%s647 + $0x8] sm:$0xff] %v642
    %650 = vst [vmem:[%s647 + $0x10] sm:$0xff] %v643
    // Predicated region
    $region26: #{tpu_custom_call.1} parent=1 // pred_check
      _
    $region27: #{tpu_custom_call.1} parent=1 // pred_check_branch
      %652 = sbr.rel (0) target = $region29
    $region28: #{tpu_custom_call.1} parent=1 // pred_region
      %s654 = ssub.s32 768, 768
      %655 = vsyncadd [#allocation4], %s654
      %s656 = sshll.u32 [#allocation5], 4
      %s657 = int_to_ptr.vmem [resolvable:$true] %s656
      %662 = dma.vmem_to_hbm [thread:$0]  %s657, 768, %s5, [#allocation4], 384, 384, 24
    $region29: #{tpu_custom_call.1} parent=1 // pred_fallthru
      _
    // Predicated region
    $region30: #{tpu_custom_call.1} parent=1 // pred_check
      _
    $region31: #{tpu_custom_call.1} parent=1 // pred_check_branch
      %664 = sbr.rel (0) target = $region33
    $region32: #{tpu_custom_call.1} parent=1 // pred_region
      %665 = dma.done [#allocation4], 768
    $region33: #{tpu_custom_call.1} parent=1 // pred_fallthru
      _
    %666 = vsyncpa [#allocation3], 1
    %667 = vsyncpa [#allocation4], 1

</llo_original>
